<compile_context>
chip_gen: v7x
topology: tpu7x:2x2x1
jax: 0.10.0
libtpu: 0.0.40
codegen_flags: <defaults>
</compile_context>

<pallas_src>
import jax
import jax.numpy as jnp
from jax.experimental import pallas as pl
from jax.experimental.pallas import tpu as pltpu

_LANE = 128


def _round_up(n, m):
    return ((n + m - 1) // m) * m


def _max_lane_tile():
    """Largest batch-lane tile per TPU generation.

    Keeps (double-buffered x tile + [H, tm] f32 intermediates) comfortably under
    the default scoped-VMEM limit: ~16 MiB on v5e/v4 -> tm=4096 (~6-8 MiB),
    ~32 MiB on v6e/v7x -> tm=8192 (~12-15 MiB)."""
    kind = ""
    try:
        kind = jax.devices()[0].device_kind.lower()
    except Exception:
        pass
    if "v6" in kind or "v7" in kind:
        return 8192
    return 4096


def _mlp_kernel(x_ref, w1_ref, b1_ref, w2_ref, b2_ref, o_ref):
    # x_ref : [tm, dim]   native-layout batch tile (one contiguous DMA)
    # w1_ref: [H, dim]    fc1.weight (hidden zero-padded to H), VMEM-resident
    # b1_ref: [H, 1]      fc1.bias column
    # w2_ref: [H, 1]      fc2.weight column
    # b2_ref: [1, 1]      fc2.bias scalar, SMEM
    # o_ref : [1, tm]     lane-dense output row (batch on lanes)
    h = jax.lax.dot_general(
        w1_ref[...], x_ref[...],
        dimension_numbers=(((1,), (1,)), ((), ())),        # w1 @ x.T
        preferred_element_type=jnp.float32)                # MXU -> [H, tm]
    h = jnp.maximum(h + b1_ref[...], 0.0)                  # VPU bias + ReLU
    p = h * w2_ref[...]                                    # VPU
    y = jnp.sum(p, axis=0, keepdims=True)                  # XLU sublane reduce -> [1, tm]
    o_ref[...] = y + b2_ref[0, 0]                          # scalar (SMEM) add


def network_forward(x, w1, b1, w2, b2):
    """Fused MLP forward (torch nn.Linear layouts).

    x : [B, dim] float32
    w1: [hidden, dim]  (fc1.weight)
    b1: [hidden]       (fc1.bias)
    w2: [1, hidden]    (fc2.weight)
    b2: [1]            (fc2.bias)
    returns [B, 1] float32
    """
    B, dim = x.shape
    hidden = w1.shape[0]
    H = _round_up(hidden, _LANE)

    # Lane (batch) tile: as large as the VMEM budget allows; no input padding.
    tm = min(_max_lane_tile(), _round_up(B, _LANE))
    n_tiles = pl.cdiv(B, tm)
    out_w = n_tiles * tm            # only the tiny output row is tile-padded

    f32 = jnp.float32
    xf = x.astype(f32)                                                # [B, dim] native
    w1p = jnp.pad(w1.astype(f32), ((0, H - hidden), (0, 0)))          # [H, dim]
    b1p = jnp.pad(b1.astype(f32), (0, H - hidden)).reshape(H, 1)      # [H, 1]
    w2p = jnp.pad(w2.astype(f32).reshape(hidden),
                  (0, H - hidden)).reshape(H, 1)                      # [H, 1]
    b2p = b2.astype(f32).reshape(1, 1)                                # [1, 1]

    out_row = pl.pallas_call(
        _mlp_kernel,
        out_shape=jax.ShapeDtypeStruct((1, out_w), f32),
        grid=(n_tiles,),
        in_specs=[
            pl.BlockSpec((tm, dim), lambda i: (i, 0)),             # x tile, contiguous
            pl.BlockSpec((H, dim), lambda i: (0, 0)),              # w1 resident
            pl.BlockSpec((H, 1), lambda i: (0, 0)),                # b1 resident
            pl.BlockSpec((H, 1), lambda i: (0, 0)),                # w2 resident
            pl.BlockSpec(memory_space=pltpu.MemorySpace.SMEM),     # b2 scalar
        ],
        out_specs=pl.BlockSpec((1, tm), lambda i: (0, i)),
        compiler_params=pltpu.CompilerParams(
            dimension_semantics=("parallel",)),                    # both TCs on v7x
    )(xf, w1p, b1p, w2p, b2p)

    # Lanes >= B (ragged final tile) may hold garbage; slice them off here,
    # before any downstream use.
    return out_row[0, :B].reshape(B, 1)


def init_params(key, dim, hidden_size=100):
    """Deterministic PyTorch-Linear-style init (uniform +/- 1/sqrt(fan_in)),
    stored in torch nn.Linear layouts."""
    k1, k2, k3, k4 = jax.random.split(key, 4)
    bound1 = 1.0 / jnp.sqrt(jnp.float32(dim))
    bound2 = 1.0 / jnp.sqrt(jnp.float32(hidden_size))
    w1 = jax.random.uniform(k1, (hidden_size, dim), jnp.float32, -bound1, bound1)
    b1 = jax.random.uniform(k2, (hidden_size,), jnp.float32, -bound1, bound1)
    w2 = jax.random.uniform(k3, (1, hidden_size), jnp.float32, -bound2, bound2)
    b2 = jax.random.uniform(k4, (1,), jnp.float32, -bound2, bound2)
    return w1, b1, w2, b2


def _ref(x, w1, b1, w2, b2):
    return jnp.maximum(x @ w1.T + b1, 0.0) @ w2.T + b2


if __name__ == "__main__":
    key = jax.random.PRNGKey(0)
    B, dim, hidden = 8, 32, 100

    kx, kp = jax.random.split(key)
    x = jax.random.normal(kx, (B, dim), jnp.float32)
    w1, b1, w2, b2 = init_params(kp, dim, hidden)

    fwd = jax.jit(network_forward)

    # Tiny batch (single, ragged tile) — matches the original module's call shape.
    out = jax.block_until_ready(fwd(x, w1, b1, w2, b2))
    ref = _ref(x, w1, b1, w2, b2)
    assert out.shape == (B, 1)
    assert jnp.allclose(out, ref, atol=1e-4, rtol=1e-4)

    # Mid batch, not a multiple of the lane tile (exercises partial final block).
    B2 = 1000
    x2 = jax.random.normal(jax.random.PRNGKey(1), (B2, dim), jnp.float32)
    out2 = jax.block_until_ready(fwd(x2, w1, b1, w2, b2))
    assert out2.shape == (B2, 1)
    assert jnp.allclose(out2, _ref(x2, w1, b1, w2, b2), atol=1e-4, rtol=1e-4)

    # Large batch: multi-tile "parallel" grid with a ragged final tile.
    B3 = 20000
    x3 = jax.random.normal(jax.random.PRNGKey(2), (B3, dim), jnp.float32)
    out3 = jax.block_until_ready(fwd(x3, w1, b1, w2, b2))
    assert out3.shape == (B3, 1)
    assert jnp.allclose(out3, _ref(x3, w1, b1, w2, b2), atol=1e-4, rtol=1e-4)

    print("KERNEL_OK")
</pallas_src>

<mosaic_0001>
module attributes {stable_mosaic.version = 11 : i64} {
  func.func @_mlp_kernel(%arg0: i32, %arg1: memref<128x32xf32, #tpu.memory_space<vmem>>, %arg2: memref<128x32xf32, #tpu.memory_space<vmem>>, %arg3: memref<128x1xf32, #tpu.memory_space<vmem>>, %arg4: memref<128x1xf32, #tpu.memory_space<vmem>>, %arg5: memref<1x1xf32, #tpu.memory_space<smem>>, %arg6: memref<1x128xf32, #tpu.memory_space<vmem>>) attributes {dimension_semantics = [#tpu.dimension_semantics<parallel>], iteration_bounds = array<i64: 1>, scalar_prefetch = 0 : i64, scratch_operands = 0 : i64, tpu.core_type = #tpu.core_type<tc>, window_params = [{transform_indices = @transform_0, window_bounds = array<i64: 128, 32>}, {pipeline_mode = #tpu.pipeline_mode<synchronous>, transform_indices = @transform_1, window_bounds = array<i64: 128, 32>}, {pipeline_mode = #tpu.pipeline_mode<synchronous>, transform_indices = @transform_2, window_bounds = array<i64: 128, 1>}, {pipeline_mode = #tpu.pipeline_mode<synchronous>, transform_indices = @transform_3, window_bounds = array<i64: 128, 1>}, {transform_indices = @transform_4, window_bounds = array<i64: 1, 1>}, {transform_indices = @transform_5, window_bounds = array<i64: 1, 128>}]} {
    %c0 = arith.constant 0 : index
    %c0_0 = arith.constant 0 : index
    %0 = vector.load %arg2[%c0, %c0_0] : memref<128x32xf32, #tpu.memory_space<vmem>>, vector<128x32xf32>
    %c0_1 = arith.constant 0 : index
    %c0_2 = arith.constant 0 : index
    %1 = vector.load %arg1[%c0_1, %c0_2] : memref<128x32xf32, #tpu.memory_space<vmem>>, vector<128x32xf32>
    %cst = arith.constant dense<0.000000e+00> : vector<128x128xf32>
    %2 = tpu.matmul %0, %1, %cst {dimension_numbers = #tpu.dot_dimension_numbers<[1], [1], [0], [0], [0, 0, 1, 0], [], []>} : vector<128x32xf32>, vector<128x32xf32>, vector<128x128xf32> -> vector<128x128xf32>
    %c0_3 = arith.constant 0 : index
    %c0_4 = arith.constant 0 : index
    %3 = vector.load %arg3[%c0_3, %c0_4] : memref<128x1xf32, #tpu.memory_space<vmem>>, vector<128x1xf32>
    %4 = vector.broadcast %3 : vector<128x1xf32> to vector<128x128xf32>
    %5 = arith.addf %2, %4 : vector<128x128xf32>
    %cst_5 = arith.constant 0.000000e+00 : f32
    %6 = vector.broadcast %cst_5 : f32 to vector<128x128xf32>
    %7 = arith.maximumf %5, %6 : vector<128x128xf32>
    %c0_6 = arith.constant 0 : index
    %c0_7 = arith.constant 0 : index
    %8 = vector.load %arg4[%c0_6, %c0_7] : memref<128x1xf32, #tpu.memory_space<vmem>>, vector<128x1xf32>
    %9 = vector.broadcast %8 : vector<128x1xf32> to vector<128x128xf32>
    %10 = arith.mulf %7, %9 : vector<128x128xf32>
    %cst_8 = arith.constant dense<0.000000e+00> : vector<128xf32>
    %11 = vector.multi_reduction <add>, %10, %cst_8 [0] : vector<128x128xf32> to vector<128xf32>
    %12 = vector.shape_cast %11 : vector<128xf32> to vector<1x128xf32>
    %c0_9 = arith.constant 0 : index
    %c0_10 = arith.constant 0 : index
    %13 = memref.load %arg5[%c0_9, %c0_10] : memref<1x1xf32, #tpu.memory_space<smem>>
    %14 = vector.broadcast %13 : f32 to vector<1x128xf32>
    %15 = arith.addf %12, %14 : vector<1x128xf32>
    %c0_11 = arith.constant 0 : index
    %c0_12 = arith.constant 0 : index
    %16 = vector.load %arg6[%c0_11, %c0_12] : memref<1x128xf32, #tpu.memory_space<vmem>>, vector<1x128xf32>
    tpu.vector_store %arg6[%c0_11, %c0_12], %15 {strides = array<i32>} : memref<1x128xf32, #tpu.memory_space<vmem>>, vector<1x128xf32>,
    return
  }
  func.func @transform_0(%arg0: i32) -> (i32, i32) {
    %c0_i32 = arith.constant 0 : i32
    %c0_i32_0 = arith.constant 0 : i32
    return %arg0, %c0_i32 : i32, i32
  }
  func.func @transform_1(%arg0: i32) -> (i32, i32) {
    %c0_i32 = arith.constant 0 : i32
    %c0_i32_0 = arith.constant 0 : i32
    %c0_i32_1 = arith.constant 0 : i32
    return %c0_i32, %c0_i32_0 : i32, i32
  }
  func.func @transform_2(%arg0: i32) -> (i32, i32) {
    %c0_i32 = arith.constant 0 : i32
    %c0_i32_0 = arith.constant 0 : i32
    %c0_i32_1 = arith.constant 0 : i32
    return %c0_i32, %c0_i32_0 : i32, i32
  }
  func.func @transform_3(%arg0: i32) -> (i32, i32) {
    %c0_i32 = arith.constant 0 : i32
    %c0_i32_0 = arith.constant 0 : i32
    %c0_i32_1 = arith.constant 0 : i32
    return %c0_i32, %c0_i32_0 : i32, i32
  }
  func.func @transform_4(%arg0: i32) -> (i32, i32) {
    %c0_i32 = arith.constant 0 : i32
    %c0_i32_0 = arith.constant 0 : i32
    %c0_i32_1 = arith.constant 0 : i32
    return %c0_i32, %c0_i32_0 : i32, i32
  }
  func.func @transform_5(%arg0: i32) -> (i32, i32) {
    %c0_i32 = arith.constant 0 : i32
    %c0_i32_0 = arith.constant 0 : i32
    return %c0_i32, %arg0 : i32, i32
  }
}

</mosaic_0001>

<llo_original>
// kernel: network_forward.1
$region0: #{network_forward.1}
  #allocation0 [shape = 'u32[]', space=smem, size = 0x4, offset = 0x4, fixed_abs, tag = 'smem constant byte address 0x4 - core index']
  #allocation1 [shape = 'u32[144,128]{1,0:T(1,128)}', space=vmem, size = 0x12000, scoped, tag = 'internal scratch']
  #allocation2 [shape = 'f32[1,1]{1,0:T(1,128)S(6)}', space=smem, size = 0x200, scoped, tag = 'scoped memory for network_forward.1']
  %s0 = inlined_call_operand.vmem [shape: f32[8,32], index: 0, kind: input, shape index: {}]
  %s1 = inlined_call_operand.vmem [shape: f32[128,32], index: 1, kind: input, shape index: {}]
  %s2 = inlined_call_operand.vmem [shape: f32[128,1], index: 2, kind: input, shape index: {}]
  %s3 = inlined_call_operand.vmem [shape: f32[128,1], index: 3, kind: input, shape index: {}]
  %s4 = inlined_call_operand.<no memory space> [shape: f32[1,1], index: 4, kind: input, shape index: {}]
  %s5 = inlined_call_operand.vmem [shape: f32[1,128], index: 5, kind: output, shape index: {}]
  %s6 = sld [smem:[#allocation0]]
  $region30: #{network_forward.1} parent=0
    _
  %s8 = ssub.s32 1, %s6
  %s9 = scalar_select 0, %s8, %s6
  %10 = sst [smem:[#allocation2]] %s4
  // Predicated region
  $region2: #{network_forward.1} parent=0 // pred_check
    _
  $region3: #{network_forward.1} parent=0 // pred_check_branch
    %12 = sbr.rel (0) target = $region5
  $region4: #{network_forward.1} parent=0 // pred_region
    _
  $region5: #{network_forward.1} parent=0 // pred_fallthru
    _
  // Predicated region
  $region6: #{network_forward.1} parent=0 // pred_check
    _
  $region7: #{network_forward.1} parent=0 // pred_check_branch
    %14 = sbr.rel (0) target = $region9
  $region8: #{network_forward.1} parent=0 // pred_region
    _
  $region9: #{network_forward.1} parent=0 // pred_fallthru
    _
  // Predicated region
  $region10: #{network_forward.1} parent=0 // pred_check
    _
  $region11: #{network_forward.1} parent=0 // pred_check_branch
    %16 = sbr.rel (0) target = $region13
  $region12: #{network_forward.1} parent=0 // pred_region
    _
  $region13: #{network_forward.1} parent=0 // pred_fallthru
    _
  // Predicated region
  $region14: #{network_forward.1} parent=0 // pred_check
    _
  $region15: #{network_forward.1} parent=0 // pred_check_branch
    %18 = sbr.rel (0) target = $region17
  $region16: #{network_forward.1} parent=0 // pred_region
    _
  $region17: #{network_forward.1} parent=0 // pred_fallthru
    _
  // Predicated region
  $region18: #{network_forward.1} parent=0 // pred_check
    _
  $region19: #{network_forward.1} parent=0 // pred_check_branch
    %20 = sbr.rel (0) target = $region21
  $region20: #{network_forward.1} parent=0 // pred_region
    _
  $region21: #{network_forward.1} parent=0 // pred_fallthru
    _
  %v21 = vld [vmem:[%s1] sm:$0xff]
  %v22 = vld [vmem:[%s1 + $0x8] sm:$0xff]
  %v23 = vld [vmem:[%s1 + $0x10] sm:$0xff]
  %v24 = vld [vmem:[%s1 + $0x18] sm:$0xff]
  %v25 = vld [vmem:[%s1 + $0x20] sm:$0xff]
  %v26 = vld [vmem:[%s1 + $0x28] sm:$0xff]
  %v27 = vld [vmem:[%s1 + $0x30] sm:$0xff]
  %v28 = vld [vmem:[%s1 + $0x38] sm:$0xff]
  %v29 = vld [vmem:[%s1 + $0x40] sm:$0xff]
  %v30 = vld [vmem:[%s1 + $0x48] sm:$0xff]
  %v31 = vld [vmem:[%s1 + $0x50] sm:$0xff]
  %v32 = vld [vmem:[%s1 + $0x58] sm:$0xff]
  %v33 = vld [vmem:[%s1 + $0x60] sm:$0xff]
  %v34 = vld [vmem:[%s1 + $0x68] sm:$0xff]
  %v35 = vld [vmem:[%s1 + $0x70] sm:$0xff]
  %v36 = vld [vmem:[%s1 + $0x78] sm:$0xff]
  %v37 = vld [vmem:[%s0] sm:$0xff]
  %v38 = vld [vmem:[%s0 + $0x8] sm:$0xff]
  %v39 = vld [vmem:[%s0 + $0x10] sm:$0xff]
  %v40 = vld [vmem:[%s0 + $0x18] sm:$0xff]
  %v41 = vld [vmem:[%s0 + $0x20] sm:$0xff]
  %v42 = vld [vmem:[%s0 + $0x28] sm:$0xff]
  %v43 = vld [vmem:[%s0 + $0x30] sm:$0xff]
  %v44 = vld [vmem:[%s0 + $0x38] sm:$0xff]
  %v45 = vld [vmem:[%s0 + $0x40] sm:$0xff]
  %v46 = vld [vmem:[%s0 + $0x48] sm:$0xff]
  %v47 = vld [vmem:[%s0 + $0x50] sm:$0xff]
  %v48 = vld [vmem:[%s0 + $0x58] sm:$0xff]
  %v49 = vld [vmem:[%s0 + $0x60] sm:$0xff]
  %v50 = vld [vmem:[%s0 + $0x68] sm:$0xff]
  %v51 = vld [vmem:[%s0 + $0x70] sm:$0xff]
  %v52 = vld [vmem:[%s0 + $0x78] sm:$0xff]
  %v53 = vld [vmem:[%s2] sm:$0xff]
  %v54 = vld [vmem:[%s2 + $0x8] sm:$0xff]
  %v55 = vld [vmem:[%s2 + $0x10] sm:$0xff]
  %v56 = vld [vmem:[%s2 + $0x18] sm:$0xff]
  %v57 = vld [vmem:[%s2 + $0x20] sm:$0xff]
  %v58 = vld [vmem:[%s2 + $0x28] sm:$0xff]
  %v59 = vld [vmem:[%s2 + $0x30] sm:$0xff]
  %v60 = vld [vmem:[%s2 + $0x38] sm:$0xff]
  %v61 = vld [vmem:[%s2 + $0x40] sm:$0xff]
  %v62 = vld [vmem:[%s2 + $0x48] sm:$0xff]
  %v63 = vld [vmem:[%s2 + $0x50] sm:$0xff]
  %v64 = vld [vmem:[%s2 + $0x58] sm:$0xff]
  %v65 = vld [vmem:[%s2 + $0x60] sm:$0xff]
  %v66 = vld [vmem:[%s2 + $0x68] sm:$0xff]
  %v67 = vld [vmem:[%s2 + $0x70] sm:$0xff]
  %v68 = vld [vmem:[%s2 + $0x78] sm:$0xff]
  %70 = vset.pattern.permute.xlu0 0
  %71 = vperm.xlu0 %70, %v53
  %v72 = vpop.permute.xlu0 %71
  %75 = vset.pattern.permute.xlu0 0
  %76 = vperm.xlu0 %75, %v54
  %v77 = vpop.permute.xlu0 %76
  %80 = vset.pattern.permute.xlu0 0
  %81 = vperm.xlu0 %80, %v55
  %v82 = vpop.permute.xlu0 %81
  %85 = vset.pattern.permute.xlu0 0
  %86 = vperm.xlu0 %85, %v56
  %v87 = vpop.permute.xlu0 %86
  %90 = vset.pattern.permute.xlu0 0
  %91 = vperm.xlu0 %90, %v57
  %v92 = vpop.permute.xlu0 %91
  %95 = vset.pattern.permute.xlu0 0
  %96 = vperm.xlu0 %95, %v58
  %v97 = vpop.permute.xlu0 %96
  %100 = vset.pattern.permute.xlu0 0
  %101 = vperm.xlu0 %100, %v59
  %v102 = vpop.permute.xlu0 %101
  %105 = vset.pattern.permute.xlu0 0
  %106 = vperm.xlu0 %105, %v60
  %v107 = vpop.permute.xlu0 %106
  %110 = vset.pattern.permute.xlu0 0
  %111 = vperm.xlu0 %110, %v61
  %v112 = vpop.permute.xlu0 %111
  %115 = vset.pattern.permute.xlu0 0
  %116 = vperm.xlu0 %115, %v62
  %v117 = vpop.permute.xlu0 %116
  %120 = vset.pattern.permute.xlu0 0
  %121 = vperm.xlu0 %120, %v63
  %v122 = vpop.permute.xlu0 %121
  %125 = vset.pattern.permute.xlu0 0
  %126 = vperm.xlu0 %125, %v64
  %v127 = vpop.permute.xlu0 %126
  %130 = vset.pattern.permute.xlu0 0
  %131 = vperm.xlu0 %130, %v65
  %v132 = vpop.permute.xlu0 %131
  %135 = vset.pattern.permute.xlu0 0
  %136 = vperm.xlu0 %135, %v66
  %v137 = vpop.permute.xlu0 %136
  %140 = vset.pattern.permute.xlu0 0
  %141 = vperm.xlu0 %140, %v67
  %v142 = vpop.permute.xlu0 %141
  %145 = vset.pattern.permute.xlu0 0
  %146 = vperm.xlu0 %145, %v68
  %v147 = vpop.permute.xlu0 %146
  %vm149 = vcmask 261120
  %v151 = vsel %vm149, %v21, 0
  %v154 = vsel %vm149, %v22, 0
  %v157 = vsel %vm149, %v23, 0
  %v160 = vsel %vm149, %v24, 0
  %v163 = vsel %vm149, %v25, 0
  %v166 = vsel %vm149, %v26, 0
  %v169 = vsel %vm149, %v27, 0
  %v172 = vsel %vm149, %v28, 0
  %v175 = vsel %vm149, %v29, 0
  %v178 = vsel %vm149, %v30, 0
  %v181 = vsel %vm149, %v31, 0
  %v184 = vsel %vm149, %v32, 0
  %v187 = vsel %vm149, %v33, 0
  %v190 = vsel %vm149, %v34, 0
  %v193 = vsel %vm149, %v35, 0
  %v196 = vsel %vm149, %v36, 0
  %v199 = vsel %vm149, %v37, 0
  %v202 = vsel %vm149, %v38, 0
  %v205 = vsel %vm149, %v39, 0
  %v208 = vsel %vm149, %v40, 0
  %v211 = vsel %vm149, %v41, 0
  %v214 = vsel %vm149, %v42, 0
  %v217 = vsel %vm149, %v43, 0
  %v220 = vsel %vm149, %v44, 0
  %v223 = vsel %vm149, %v45, 0
  %v226 = vsel %vm149, %v46, 0
  %v229 = vsel %vm149, %v47, 0
  %v232 = vsel %vm149, %v48, 0
  %v235 = vsel %vm149, %v49, 0
  %v238 = vsel %vm149, %v50, 0
  %v241 = vsel %vm149, %v51, 0
  %v244 = vsel %vm149, %v52, 0
  %246 = vmatprep.subr.mxu0 0.0
  %247 = vmatpush1.xpose.msra.mxu0 %v199
  %248 = vmatprep.subr.mxu0 0.0
  %249 = vmatpush1.xpose.msra.mxu0 %v202
  %250 = vmatprep.subr.mxu0 0.0
  %251 = vmatpush1.xpose.msra.mxu0 %v205
  %252 = vmatprep.subr.mxu0 0.0
  %253 = vmatpush1.xpose.msra.mxu0 %v208
  %254 = vmatprep.subr.mxu0 0.0
  %255 = vmatpush1.xpose.msra.mxu0 %v211
  %256 = vmatprep.subr.mxu0 0.0
  %257 = vmatpush1.xpose.msra.mxu0 %v214
  %258 = vmatprep.subr.mxu0 0.0
  %259 = vmatpush1.xpose.msra.mxu0 %v217
  %260 = vmatprep.subr.mxu0 0.0
  %261 = vmatpush1.xpose.msra.mxu0 %v220
  %262 = vmatprep.subr.mxu0 0.0
  %263 = vmatpush1.xpose.msra.mxu0 %v223
  %264 = vmatprep.subr.mxu0 0.0
  %265 = vmatpush1.xpose.msra.mxu0 %v226
  %266 = vmatprep.subr.mxu0 0.0
  %267 = vmatpush1.xpose.msra.mxu0 %v229
  %268 = vmatprep.subr.mxu0 0.0
  %269 = vmatpush1.xpose.msra.mxu0 %v232
  %270 = vmatprep.subr.mxu0 0.0
  %271 = vmatpush1.xpose.msra.mxu0 %v235
  %272 = vmatprep.subr.mxu0 0.0
  %273 = vmatpush1.xpose.msra.mxu0 %v238
  %274 = vmatprep.subr.mxu0 0.0
  %275 = vmatpush1.xpose.msra.mxu0 %v241
  %276 = vmatprep.subr.mxu0 0.0
  %277 = vmatpush1.xpose.msra.mxu0 %v244
  %278 = vmatprep.subr.mxu0 0.0
  %279 = vmatpush1.xpose.msra.mxu0 0.0
  %280 = vmatprep.subr.mxu0 0.0
  %281 = vmatpush1.xpose.msra.mxu0 0.0
  %282 = vmatprep.subr.mxu0 0.0
  %283 = vmatpush1.xpose.msra.mxu0 0.0
  %284 = vmatprep.subr.mxu0 0.0
  %285 = vmatpush1.xpose.msra.mxu0 0.0
  %286 = vmatprep.subr.mxu0 0.0
  %287 = vmatpush1.xpose.msra.mxu0 0.0
  %288 = vmatprep.subr.mxu0 0.0
  %289 = vmatpush1.xpose.msra.mxu0 0.0
  %290 = vmatprep.subr.mxu0 0.0
  %291 = vmatpush1.xpose.msra.mxu0 0.0
  %292 = vmatprep.subr.mxu0 0.0
  %293 = vmatpush1.xpose.msra.mxu0 0.0
  %294 = vmatprep.subr.mxu0 0.0
  %295 = vmatpush1.xpose.msra.mxu0 0.0
  %296 = vmatprep.subr.mxu0 0.0
  %297 = vmatpush1.xpose.msra.mxu0 0.0
  %298 = vmatprep.subr.mxu0 0.0
  %299 = vmatpush1.xpose.msra.mxu0 0.0
  %300 = vmatprep.subr.mxu0 0.0
  %301 = vmatpush1.xpose.msra.mxu0 0.0
  %302 = vmatprep.subr.mxu0 0.0
  %303 = vmatpush1.xpose.msra.mxu0 0.0
  %304 = vmatprep.subr.mxu0 0.0
  %305 = vmatpush1.xpose.msra.mxu0 0.0
  %306 = vmatprep.subr.mxu0 0.0
  %307 = vmatpush1.xpose.msra.mxu0 0.0
  %308 = vmatprep.subr.mxu0 0.0
  %309 = vmatpush1.xpose.msra.mxu0 0.0
  %310 = vmatprep.mubr.f32.mxu0 0.0
  %311 = vmatmul.mubr.f32.gmra.mrb[0].mxu0 %v151
  %v312 = vpop.f32.mrb[0].mxu0
  %v313 = vadd.f32 %v72, %v312
  %v314 = vpop.f32.mrb[0].mxu0
  %315 = vmatprep.mubr.f32.mxu0 0.0
  %316 = vmatmul.mubr.f32.gmra.mrb[0].mxu0 %v154
  %v317 = vpop.f32.mrb[0].mxu0
  %v318 = vadd.f32 %v77, %v317
  %v319 = vpop.f32.mrb[0].mxu0
  %320 = vmatprep.mubr.f32.mxu0 0.0
  %321 = vmatmul.mubr.f32.gmra.mrb[0].mxu0 %v157
  %v322 = vpop.f32.mrb[0].mxu0
  %v323 = vadd.f32 %v82, %v322
  %v324 = vpop.f32.mrb[0].mxu0
  %325 = vmatprep.mubr.f32.mxu0 0.0
  %326 = vmatmul.mubr.f32.gmra.mrb[0].mxu0 %v160
  %v327 = vpop.f32.mrb[0].mxu0
  %v328 = vadd.f32 %v87, %v327
  %v329 = vpop.f32.mrb[0].mxu0
  %330 = vmatprep.mubr.f32.mxu0 0.0
  %331 = vmatmul.mubr.f32.gmra.mrb[0].mxu0 %v163
  %v332 = vpop.f32.mrb[0].mxu0
  %v333 = vadd.f32 %v92, %v332
  %v334 = vpop.f32.mrb[0].mxu0
  %335 = vmatprep.mubr.f32.mxu0 0.0
  %336 = vmatmul.mubr.f32.gmra.mrb[0].mxu0 %v166
  %v337 = vpop.f32.mrb[0].mxu0
  %v338 = vadd.f32 %v97, %v337
  %v339 = vpop.f32.mrb[0].mxu0
  %340 = vmatprep.mubr.f32.mxu0 0.0
  %341 = vmatmul.mubr.f32.gmra.mrb[0].mxu0 %v169
  %v342 = vpop.f32.mrb[0].mxu0
  %v343 = vadd.f32 %v102, %v342
  %v344 = vpop.f32.mrb[0].mxu0
  %345 = vmatprep.mubr.f32.mxu0 0.0
  %346 = vmatmul.mubr.f32.gmra.mrb[0].mxu0 %v172
  %v347 = vpop.f32.mrb[0].mxu0
  %v348 = vadd.f32 %v107, %v347
  %v349 = vpop.f32.mrb[0].mxu0
  %350 = vmatprep.mubr.f32.mxu0 0.0
  %351 = vmatmul.mubr.f32.gmra.mrb[0].mxu0 %v175
  %v352 = vpop.f32.mrb[0].mxu0
  %v353 = vadd.f32 %v112, %v352
  %v354 = vpop.f32.mrb[0].mxu0
  %355 = vmatprep.mubr.f32.mxu0 0.0
  %356 = vmatmul.mubr.f32.gmra.mrb[0].mxu0 %v178
  %v357 = vpop.f32.mrb[0].mxu0
  %v358 = vadd.f32 %v117, %v357
  %v359 = vpop.f32.mrb[0].mxu0
  %360 = vmatprep.mubr.f32.mxu0 0.0
  %361 = vmatmul.mubr.f32.gmra.mrb[0].mxu0 %v181
  %v362 = vpop.f32.mrb[0].mxu0
  %v363 = vadd.f32 %v122, %v362
  %v364 = vpop.f32.mrb[0].mxu0
  %365 = vmatprep.mubr.f32.mxu0 0.0
  %366 = vmatmul.mubr.f32.gmra.mrb[0].mxu0 %v184
  %v367 = vpop.f32.mrb[0].mxu0
  %v368 = vadd.f32 %v127, %v367
  %v369 = vpop.f32.mrb[0].mxu0
  %370 = vmatprep.mubr.f32.mxu0 0.0
  %371 = vmatmul.mubr.f32.gmra.mrb[0].mxu0 %v187
  %v372 = vpop.f32.mrb[0].mxu0
  %v373 = vadd.f32 %v132, %v372
  %v374 = vpop.f32.mrb[0].mxu0
  %375 = vmatprep.mubr.f32.mxu0 0.0
  %376 = vmatmul.mubr.f32.gmra.mrb[0].mxu0 %v190
  %v377 = vpop.f32.mrb[0].mxu0
  %v378 = vadd.f32 %v137, %v377
  %v379 = vpop.f32.mrb[0].mxu0
  %380 = vmatprep.mubr.f32.mxu0 0.0
  %381 = vmatmul.mubr.f32.gmra.mrb[0].mxu0 %v193
  %v382 = vpop.f32.mrb[0].mxu0
  %v383 = vadd.f32 %v142, %v382
  %v384 = vpop.f32.mrb[0].mxu0
  %385 = vmatprep.mubr.f32.mxu0 0.0
  %386 = vmatmul.mubr.f32.gmra.mrb[0].mxu0 %v196
  %v387 = vpop.f32.mrb[0].mxu0
  %v388 = vadd.f32 %v147, %v387
  %v389 = vpop.f32.mrb[0].mxu0
  %390 = vdwg.mxu0
  %v391 = vmax.f32 %v313, 0.0
  %v392 = vmax.f32 %v318, 0.0
  %v393 = vmax.f32 %v323, 0.0
  %v394 = vmax.f32 %v328, 0.0
  %v395 = vmax.f32 %v333, 0.0
  %v396 = vmax.f32 %v338, 0.0
  %v397 = vmax.f32 %v343, 0.0
  %v398 = vmax.f32 %v348, 0.0
  %v399 = vmax.f32 %v353, 0.0
  %v400 = vmax.f32 %v358, 0.0
  %v401 = vmax.f32 %v363, 0.0
  %v402 = vmax.f32 %v368, 0.0
  %v403 = vmax.f32 %v373, 0.0
  %v404 = vmax.f32 %v378, 0.0
  %v405 = vmax.f32 %v383, 0.0
  %v406 = vmax.f32 %v388, 0.0
  %v407 = vld [vmem:[%s3] sm:$0xff]
  %v408 = vld [vmem:[%s3 + $0x8] sm:$0xff]
  %v409 = vld [vmem:[%s3 + $0x10] sm:$0xff]
  %v410 = vld [vmem:[%s3 + $0x18] sm:$0xff]
  %v411 = vld [vmem:[%s3 + $0x20] sm:$0xff]
  %v412 = vld [vmem:[%s3 + $0x28] sm:$0xff]
  %v413 = vld [vmem:[%s3 + $0x30] sm:$0xff]
  %v414 = vld [vmem:[%s3 + $0x38] sm:$0xff]
  %v415 = vld [vmem:[%s3 + $0x40] sm:$0xff]
  %v416 = vld [vmem:[%s3 + $0x48] sm:$0xff]
  %v417 = vld [vmem:[%s3 + $0x50] sm:$0xff]
  %v418 = vld [vmem:[%s3 + $0x58] sm:$0xff]
  %v419 = vld [vmem:[%s3 + $0x60] sm:$0xff]
  %v420 = vld [vmem:[%s3 + $0x68] sm:$0xff]
  %v421 = vld [vmem:[%s3 + $0x70] sm:$0xff]
  %v422 = vld [vmem:[%s3 + $0x78] sm:$0xff]
  %424 = vset.pattern.permute.xlu0 0
  %425 = vperm.xlu0 %424, %v407
  %v426 = vpop.permute.xlu0 %425
  %429 = vset.pattern.permute.xlu0 0
  %430 = vperm.xlu0 %429, %v408
  %v431 = vpop.permute.xlu0 %430
  %434 = vset.pattern.permute.xlu0 0
  %435 = vperm.xlu0 %434, %v409
  %v436 = vpop.permute.xlu0 %435
  %439 = vset.pattern.permute.xlu0 0
  %440 = vperm.xlu0 %439, %v410
  %v441 = vpop.permute.xlu0 %440
  %444 = vset.pattern.permute.xlu0 0
  %445 = vperm.xlu0 %444, %v411
  %v446 = vpop.permute.xlu0 %445
  %449 = vset.pattern.permute.xlu0 0
  %450 = vperm.xlu0 %449, %v412
  %v451 = vpop.permute.xlu0 %450
  %454 = vset.pattern.permute.xlu0 0
  %455 = vperm.xlu0 %454, %v413
  %v456 = vpop.permute.xlu0 %455
  %459 = vset.pattern.permute.xlu0 0
  %460 = vperm.xlu0 %459, %v414
  %v461 = vpop.permute.xlu0 %460
  %464 = vset.pattern.permute.xlu0 0
  %465 = vperm.xlu0 %464, %v415
  %v466 = vpop.permute.xlu0 %465
  %469 = vset.pattern.permute.xlu0 0
  %470 = vperm.xlu0 %469, %v416
  %v471 = vpop.permute.xlu0 %470
  %474 = vset.pattern.permute.xlu0 0
  %475 = vperm.xlu0 %474, %v417
  %v476 = vpop.permute.xlu0 %475
  %479 = vset.pattern.permute.xlu0 0
  %480 = vperm.xlu0 %479, %v418
  %v481 = vpop.permute.xlu0 %480
  %484 = vset.pattern.permute.xlu0 0
  %485 = vperm.xlu0 %484, %v419
  %v486 = vpop.permute.xlu0 %485
  %489 = vset.pattern.permute.xlu0 0
  %490 = vperm.xlu0 %489, %v420
  %v491 = vpop.permute.xlu0 %490
  %494 = vset.pattern.permute.xlu0 0
  %495 = vperm.xlu0 %494, %v421
  %v496 = vpop.permute.xlu0 %495
  %499 = vset.pattern.permute.xlu0 0
  %500 = vperm.xlu0 %499, %v422
  %v501 = vpop.permute.xlu0 %500
  %v503 = vmul.f32 %v391, %v426
  %v504 = vmul.f32 %v392, %v431
  %v505 = vmul.f32 %v393, %v436
  %v506 = vmul.f32 %v394, %v441
  %v507 = vmul.f32 %v395, %v446
  %v508 = vmul.f32 %v396, %v451
  %v509 = vmul.f32 %v397, %v456
  %v510 = vmul.f32 %v398, %v461
  %v511 = vmul.f32 %v399, %v466
  %v512 = vmul.f32 %v400, %v471
  %v513 = vmul.f32 %v401, %v476
  %v514 = vmul.f32 %v402, %v481
  %v515 = vmul.f32 %v403, %v486
  %v516 = vmul.f32 %v404, %v491
  %v517 = vmul.f32 %v405, %v496
  %v518 = vmul.f32 %v406, %v501
  %v519 = vadd.f32 %v503, %v504
  %v520 = vadd.f32 %v519, %v505
  %v521 = vadd.f32 %v520, %v506
  %v522 = vadd.f32 %v521, %v507
  %v523 = vadd.f32 %v522, %v508
  %v524 = vadd.f32 %v523, %v509
  %v525 = vadd.f32 %v524, %v510
  %v526 = vadd.f32 %v525, %v511
  %v527 = vadd.f32 %v526, %v512
  %v528 = vadd.f32 %v527, %v513
  %v529 = vadd.f32 %v528, %v514
  %v530 = vadd.f32 %v529, %v515
  %v531 = vadd.f32 %v530, %v516
  %v532 = vadd.f32 %v531, %v517
  %v533 = vadd.f32 %v532, %v518
  %v534 = vrot.slane %v533, 4
  %v535 = vadd.f32 %v533, %v534
  %v536 = vrot.slane %v535, 2
  %v537 = vadd.f32 %v535, %v536
  %v538 = vrot.slane %v537, 1
  %v539 = vadd.f32 %v537, %v538
  %s540 = sld [smem:[#allocation2]]
  %v541 = vstv %s540
  %v542 = vadd.f32 %v539, %v541
  %543 = vst [vmem:[%s5] sm:$0x1] %v542
  // Predicated region
  $region22: #{network_forward.1} parent=0 // pred_check
    _
  $region23: #{network_forward.1} parent=0 // pred_check_branch
    %545 = sbr.rel (0) target = $region25
  $region24: #{network_forward.1} parent=0 // pred_region
    _
  $region25: #{network_forward.1} parent=0 // pred_fallthru
    _
  // Predicated region
  $region26: #{network_forward.1} parent=0 // pred_check
    _
  $region27: #{network_forward.1} parent=0 // pred_check_branch
    %547 = sbr.rel (0) target = $region29
  $region28: #{network_forward.1} parent=0 // pred_region
    _
  $region29: #{network_forward.1} parent=0 // pred_fallthru
    _

</llo_original>
